<compile_context>
chip_gen: v7x
topology: tpu7x:2x2x1
jax: 0.10.0
libtpu: 0.0.40
codegen_flags: <defaults>
</compile_context>

<pallas_src>
import functools

import jax
import jax.numpy as jnp
from jax.experimental import pallas as pl
from jax.experimental.pallas import tpu as pltpu

LANE = 128  # vreg lane width (slab last dim, full 128 => contiguous DMA)


def _round_up(x, m):
    return ((x + m - 1) // m) * m


def _device_defaults():
    """Return (num_partials, target_block_bytes, vmem_limit_bytes) per chip."""
    try:
        kind = jax.devices()[0].device_kind.lower()
    except Exception:
        kind = ""
    if "v7" in kind or "7x" in kind:
        # Two TensorCores -> 2-way partial split across the "parallel" axis;
        # 8 MiB blocks amortize per-step overhead at 3.2 TB/s; 48 MiB scoped
        # VMEM covers 2 inputs x 2 buffers x 8 MiB + headroom (64 MiB per TC).
        return 2, 8 << 20, 48 << 20
    # v5e / v6e: single TensorCore.  4 MiB blocks = 16 MiB double-buffered;
    # raise the scoped limit past the v5e 16 MiB default.
    return 1, 4 << 20, 32 << 20


def _color_loss_kernel(x1_ref, x2_ref, o_ref, acc_ref, *,
                       tile_rows, inner_blocks, n_rows, needs_mask):
    """Accumulate sum((x1-x2)^2) for one partial; emit scalar on last step."""
    j = pl.program_id(0)   # partial index (parallel; maps to TCs on v7x)
    k = pl.program_id(1)   # sequential reduction step within this partial

    @pl.when(k == 0)
    def _():
        acc_ref[...] = jnp.zeros_like(acc_ref)

    d = x1_ref[...].astype(jnp.float32) - x2_ref[...].astype(jnp.float32)
    sq = d * d

    def _accumulate(vals):
        # (tile_rows, 128) -> (tile_rows//8, 8, 128) is sublane-tile aligned
        # for the f32 value, so the reshape is free and the axis-0 sum is
        # pure vreg adds on the VPU.
        acc_ref[...] += jnp.sum(vals.reshape(tile_rows // 8, 8, LANE), axis=0)

    if needs_mask:
        blk = j * inner_blocks + k          # scalar block id (unclamped)
        base = blk * tile_rows              # scalar first-row index

        @pl.when(base + tile_rows <= n_rows)
        def _():                            # interior block: no mask work
            _accumulate(sq)

        @pl.when(base + tile_rows > n_rows)
        def _():                            # boundary / phantom block
            row = jax.lax.broadcasted_iota(jnp.int32, (tile_rows, LANE), 0)
            _accumulate(jnp.where(base + row < n_rows, sq, jnp.float32(0.0)))
    else:
        _accumulate(sq)

    @pl.when(k == inner_blocks - 1)
    def _():
        o_ref[0, 0] = jnp.sum(acc_ref[...])   # one XLU reduce per partial


def color_loss(x1, x2):
    """Pallas equivalent of ColorLoss.forward(x1, x2)."""
    assert x1.shape == x2.shape, "x1 and x2 must have the same shape"
    batch = x1.shape[0]
    total = x1.size
    inv_denom = 1.0 / (2.0 * batch)

    if total == 0:
        return jnp.float32(0.0)

    x1f = x1.reshape(-1)
    x2f = x2.reshape(-1)

    # Sub-128 tail handled in plain JAX (tiny).  The common image-loss case
    # (total % 128 == 0, as in the test) goes through the kernel with zero
    # input copies.
    aligned = (total // LANE) * LANE
    tail = jnp.float32(0.0)
    if aligned < total:
        dt = x1f[aligned:].astype(jnp.float32) - x2f[aligned:].astype(jnp.float32)
        tail = jnp.sum(dt * dt)
        # TODO(synk): this prefix slice materializes an HBM copy of ~the whole
        # input when total % 128 != 0; an in-kernel ragged mask on the full
        # flat buffer would avoid it but needs a 1D/narrow-lane block path.
        x1f = x1f[:aligned]
        x2f = x2f[:aligned]

    if aligned == 0:
        return tail * jnp.float32(inv_denom)

    n_rows = aligned // LANE
    x1m = x1f.reshape(n_rows, LANE)
    x2m = x2f.reshape(n_rows, LANE)

    itemsize = jnp.dtype(x1.dtype).itemsize
    # Native sublane packing tile: 8 rows f32, 16 bf16, 32 int8/fp8.
    packing = max(8, 32 // max(int(itemsize), 1))

    num_partials_hw, target_block_bytes, vmem_limit = _device_defaults()

    max_tile_rows = max(packing,
                        (target_block_bytes // (LANE * itemsize))
                        // packing * packing)
    tile_rows = min(max_tile_rows, _round_up(n_rows, packing))

    nb = pl.cdiv(n_rows, tile_rows)              # total row-blocks
    num_partials = min(num_partials_hw, nb)      # leading parallel axis
    inner_blocks = pl.cdiv(nb, num_partials)     # blocks per partial
    needs_mask = (n_rows % tile_rows != 0) or (nb % num_partials != 0)

    if nb % num_partials == 0:
        def idx_map(j, k):
            return (j * inner_blocks + k, 0)
    else:
        def idx_map(j, k):
            # Clamp the phantom last block of the second partial; its
            # contribution is zeroed by the in-kernel row mask.
            return (jnp.minimum(j * inner_blocks + k, nb - 1), 0)

    kernel = functools.partial(
        _color_loss_kernel,
        tile_rows=tile_rows,
        inner_blocks=inner_blocks,
        n_rows=n_rows,
        needs_mask=needs_mask,
    )

    partials = pl.pallas_call(
        kernel,
        out_shape=jax.ShapeDtypeStruct((num_partials, 1), jnp.float32),
        grid_spec=pltpu.PrefetchScalarGridSpec(
            num_scalar_prefetch=0,
            grid=(num_partials, inner_blocks),
            in_specs=[
                pl.BlockSpec((tile_rows, LANE), idx_map),
                pl.BlockSpec((tile_rows, LANE), idx_map),
            ],
            out_specs=pl.BlockSpec(
                (1, 1), lambda j, k: (j, 0),
                memory_space=pltpu.MemorySpace.SMEM,
            ),
            scratch_shapes=[pltpu.VMEM((8, LANE), jnp.float32)],
        ),
        compiler_params=pltpu.CompilerParams(
            # Leading axis is independent (per-partial) -> shard across TCs
            # on v7x; inner axis is the sequential reduction.
            dimension_semantics=("parallel", "arbitrary"),
            vmem_limit_bytes=int(vmem_limit),
        ),
        cost_estimate=pl.CostEstimate(
            flops=3 * int(aligned),
            transcendentals=0,
            bytes_accessed=2 * int(aligned) * int(itemsize),
        ),
    )(x1m, x2m)

    return (jnp.sum(partials) + tail) * jnp.float32(inv_denom)


if __name__ == "__main__":
    key = jax.random.PRNGKey(0)
    k1, k2 = jax.random.split(key)

    # Small NCHW inputs consistent with a typical image loss.
    B, C, H, W = 2, 4, 16, 16
    x1 = jax.random.normal(k1, (B, C, H, W), dtype=jnp.float32)
    x2 = jax.random.normal(k2, (B, C, H, W), dtype=jnp.float32)

    loss_fn = jax.jit(color_loss)
    loss = jax.block_until_ready(loss_fn(x1, x2))

    # Pure-JAX reference check (same semantics as the torch module).
    ref = jnp.sum((x1 - x2) ** 2) / (2.0 * B)
    assert jnp.allclose(loss, ref, rtol=1e-5, atol=1e-5), (loss, ref)

    print("KERNEL_OK")
</pallas_src>

<mosaic_0001>
module attributes {stable_mosaic.version = 11 : i64} {
  func.func @_color_loss_kernel(%arg0: i32, %arg1: i32, %arg2: memref<16x128xf32, #tpu.memory_space<vmem>>, %arg3: memref<16x128xf32, #tpu.memory_space<vmem>>, %arg4: memref<1x1xf32, #tpu.memory_space<smem>>, %arg5: memref<8x128xf32, #tpu.memory_space<vmem>>) attributes {dimension_semantics = [#tpu.dimension_semantics<parallel>, #tpu.dimension_semantics<arbitrary>], iteration_bounds = array<i64: 1, 1>, scalar_prefetch = 0 : i64, scratch_operands = 1 : i64, tpu.core_type = #tpu.core_type<tc>, window_params = [{transform_indices = @transform_0, window_bounds = array<i64: 16, 128>}, {transform_indices = @transform_1, window_bounds = array<i64: 16, 128>}, {transform_indices = @transform_2, window_bounds = array<i64: 1, 1>}]} {
    %c0_i32 = arith.constant 0 : i32
    %0 = arith.cmpi eq, %arg1, %c0_i32 : i32
    %1 = arith.extui %0 : i1 to i32
    %c0_i32_0 = arith.constant 0 : i32
    %2 = arith.cmpi ne, %1, %c0_i32_0 : i32
    scf.if %2 {
      %cst_10 = arith.constant 0.000000e+00 : f32
      %15 = vector.broadcast %cst_10 : f32 to vector<8x128xf32>
      %c0_11 = arith.constant 0 : index
      %c0_12 = arith.constant 0 : index
      %16 = vector.load %arg5[%c0_11, %c0_12] : memref<8x128xf32, #tpu.memory_space<vmem>>, vector<8x128xf32>
      tpu.vector_store %arg5[%c0_11, %c0_12], %15 {strides = array<i32>} : memref<8x128xf32, #tpu.memory_space<vmem>>, vector<8x128xf32>,
    } else {
    }
    %c0 = arith.constant 0 : index
    %c0_1 = arith.constant 0 : index
    %3 = vector.load %arg2[%c0, %c0_1] : memref<16x128xf32, #tpu.memory_space<vmem>>, vector<16x128xf32>
    %c0_2 = arith.constant 0 : index
    %c0_3 = arith.constant 0 : index
    %4 = vector.load %arg3[%c0_2, %c0_3] : memref<16x128xf32, #tpu.memory_space<vmem>>, vector<16x128xf32>
    %5 = arith.subf %3, %4 : vector<16x128xf32>
    %6 = arith.mulf %5, %5 : vector<16x128xf32>
    %c0_4 = arith.constant 0 : index
    %c0_5 = arith.constant 0 : index
    %7 = vector.load %arg5[%c0_4, %c0_5] : memref<8x128xf32, #tpu.memory_space<vmem>>, vector<8x128xf32>
    %8 = vector.shape_cast %6 : vector<16x128xf32> to vector<2x8x128xf32>
    %cst = arith.constant dense<0.000000e+00> : vector<8x128xf32>
    %9 = vector.multi_reduction <add>, %8, %cst [0] : vector<2x8x128xf32> to vector<8x128xf32>
    %10 = arith.addf %7, %9 : vector<8x128xf32>
    %c0_6 = arith.constant 0 : index
    %c0_7 = arith.constant 0 : index
    %11 = vector.load %arg5[%c0_6, %c0_7] : memref<8x128xf32, #tpu.memory_space<vmem>>, vector<8x128xf32>
    tpu.vector_store %arg5[%c0_6, %c0_7], %10 {strides = array<i32>} : memref<8x128xf32, #tpu.memory_space<vmem>>, vector<8x128xf32>,
    %c0_i32_8 = arith.constant 0 : i32
    %12 = arith.cmpi eq, %arg1, %c0_i32_8 : i32
    %13 = arith.extui %12 : i1 to i32
    %c0_i32_9 = arith.constant 0 : i32
    %14 = arith.cmpi ne, %13, %c0_i32_9 : i32
    scf.if %14 {
      %c0_10 = arith.constant 0 : index
      %c0_11 = arith.constant 0 : index
      %15 = vector.load %arg5[%c0_10, %c0_11] : memref<8x128xf32, #tpu.memory_space<vmem>>, vector<8x128xf32>
      %16 = vector.shape_cast %15 : vector<8x128xf32> to vector<1x8x128xf32>
      %cst_12 = arith.constant dense<0.000000e+00> : vector<1xf32>
      %17 = vector.multi_reduction <add>, %16, %cst_12 [1, 2] : vector<1x8x128xf32> to vector<1xf32>
      %18 = vector.shape_cast %17 : vector<1xf32> to vector<1x1x1xf32>
      %19 = vector.extract %18[0, 0, 0] : f32 from vector<1x1x1xf32>
      %c0_13 = arith.constant 0 : index
      %c0_14 = arith.constant 0 : index
      %20 = memref.load %arg4[%c0_13, %c0_14] : memref<1x1xf32, #tpu.memory_space<smem>>
      memref.store %19, %arg4[%c0_13, %c0_14] : memref<1x1xf32, #tpu.memory_space<smem>>
    } else {
    }
    return
  }
  func.func @transform_0(%arg0: i32, %arg1: i32) -> (i32, i32) {
    %c1_i32 = arith.constant 1 : i32
    %0 = arith.muli %arg0, %c1_i32 : i32
    %1 = arith.addi %0, %arg1 : i32
    %c0_i32 = arith.constant 0 : i32
    %c0_i32_0 = arith.constant 0 : i32
    return %1, %c0_i32 : i32, i32
  }
  func.func @transform_1(%arg0: i32, %arg1: i32) -> (i32, i32) {
    %c1_i32 = arith.constant 1 : i32
    %0 = arith.muli %arg0, %c1_i32 : i32
    %1 = arith.addi %0, %arg1 : i32
    %c0_i32 = arith.constant 0 : i32
    %c0_i32_0 = arith.constant 0 : i32
    return %1, %c0_i32 : i32, i32
  }
  func.func @transform_2(%arg0: i32, %arg1: i32) -> (i32, i32) {
    %c0_i32 = arith.constant 0 : i32
    %c0_i32_0 = arith.constant 0 : i32
    return %arg0, %c0_i32 : i32, i32
  }
}

</mosaic_0001>

<llo_original>
// kernel: color_loss.1
$region0: #{color_loss.1}
  #allocation0 [shape = 'u32[]', space=smem, size = 0x4, offset = 0x4, fixed_abs, tag = 'smem constant byte address 0x4 - core index']
  #allocation1 [shape = 'u32[144,128]{1,0:T(1,128)}', space=vmem, size = 0x12000, scoped, tag = 'internal scratch']
  #allocation2 [shape = 'f32[8,128]{1,0:T(8,128)}', space=vmem, size = 0x1000, scoped, tag = 'scratch operand']
  %s0 = inlined_call_operand.vmem [shape: f32[16,128], index: 0, kind: input, shape index: {}]
  %s1 = inlined_call_operand.vmem [shape: f32[16,128], index: 1, kind: input, shape index: {}]
  %s2 = inlined_call_operand.hbm [shape: f32[1,1], index: 2, kind: output, shape index: {}]
  %s3 = sld [smem:[#allocation0]]
  $region26: #{color_loss.1} parent=0
    _
  %s5 = ssub.s32 1, %s3
  %s6 = scalar_select 0, %s5, %s3
  $region1: #{color_loss.1} parent=0
    #allocation3 [shape = 'u8[512]{0}', space=smem, size = 0x200, scoped, tag = 'output window, operand 0, single buffered']
    #allocation4 [shape = 's32[1]{0}', space=sflag, size = 0x4, scoped, tag = 'scoped memory for color_loss.1']
    %7 = vsyncpa [#allocation4], 0
    // Predicated region
    $region2: #{color_loss.1} parent=1 // pred_check
      _
    $region3: #{color_loss.1} parent=1 // pred_check_branch
      %9 = sbr.rel (0) target = $region5
    $region4: #{color_loss.1} parent=1 // pred_region
      %s10 = sadd.s32 0, 0
      %s11 = smul.u32 2, %s10
      %p12 = scmp.lt.s32.totalorder %s11, 1
      %s13 = scalar_select %p12, %s11, 1
      %s14 = smul.addr %s13, 8
      %s15 = scalar_lea.vmem %s0, %s14
      %s16 = sadd.s32 0, 0
      %s17 = smul.u32 2, %s16
    $region5: #{color_loss.1} parent=1 // pred_fallthru
      _
    // Predicated region
    $region6: #{color_loss.1} parent=1 // pred_check
      _
    $region7: #{color_loss.1} parent=1 // pred_check_branch
      %19 = sbr.rel (0) target = $region9
    $region8: #{color_loss.1} parent=1 // pred_region
      %s20 = sadd.s32 0, 0
      %s21 = smul.u32 2, %s20
      %p22 = scmp.lt.s32.totalorder %s21, 1
      %s23 = scalar_select %p22, %s21, 1
      %s24 = smul.addr %s23, 8
      %s25 = scalar_lea.vmem %s1, %s24
      %s26 = sadd.s32 0, 0
      %s27 = smul.u32 2, %s26
    $region9: #{color_loss.1} parent=1 // pred_fallthru
      _
    %s28 = sadd.s32 0, 0
    %s29 = smul.u32 2, %s28
    %p30 = scmp.lt.s32.totalorder %s29, 1
    %s31 = scalar_select %p30, %s29, 1
    %s32 = smul.addr %s31, 8
    %s33 = scalar_lea.vmem %s0, %s32
    %s34 = sadd.s32 0, 0
    %s35 = smul.u32 2, %s34
    %p36 = scmp.lt.s32.totalorder %s35, 1
    %s37 = scalar_select %p36, %s35, 1
    %s38 = smul.addr %s37, 8
    %s39 = scalar_lea.vmem %s1, %s38
    %s40 = sadd.s32 0, 0
    %s41 = smul.u32 2, %s40
    %p42 = scmp.lt.s32.totalorder %s41, 1
    %s43 = scalar_select %p42, %s41, 1
    %s44 = smul.addr %s43, 8
    %s45 = scalar_lea.vmem %s0, %s44
    %s46 = sadd.s32 0, 0
    %s47 = smul.u32 2, %s46
    %s48 = sadd.s32 0, 0
    %s49 = smul.u32 2, %s48
    %p50 = scmp.lt.s32.totalorder %s49, 1
    %s51 = scalar_select %p50, %s49, 1
    %s52 = smul.addr %s51, 8
    %s53 = scalar_lea.vmem %s1, %s52
    %s54 = sadd.s32 0, 0
    %s55 = smul.u32 2, %s54
    %p56 = scmp.eq.s32.totalorder 0, 0
    // Predicated region
    $region10: #{color_loss.1} parent=1 // pred_check
      %p57 = pneg %p56
    $region11: #{color_loss.1} parent=1 // pred_check_branch
      %59 = sbr.rel (%p57) target = $region13
    $region12: #{color_loss.1} parent=1 // pred_region
      %60 = vst [vmem:[#allocation2] sm:$0xff] 0.0
    $region13: #{color_loss.1} parent=1 // pred_fallthru
      _
    %v61 = vld [vmem:[%s45] sm:$0xff]
    %v62 = vld [vmem:[%s45 + $0x8] sm:$0xff]
    %v63 = vld [vmem:[%s53] sm:$0xff]
    %v64 = vld [vmem:[%s53 + $0x8] sm:$0xff]
    %v65 = vsub.f32 %v61, %v63
    %v66 = vsub.f32 %v62, %v64
    %v67 = vmul.f32 %v65, %v65
    %v68 = vmul.f32 %v66, %v66
    %v69 = vld [vmem:[#allocation2] sm:$0xff]
    %v70 = vadd.f32 %v67, %v68
    %v71 = vadd.f32 %v69, %v70
    %72 = vst [vmem:[#allocation2] sm:$0xff] %v71
    // Predicated region
    $region14: #{color_loss.1} parent=1 // pred_check
      %p73 = pneg %p56
    $region15: #{color_loss.1} parent=1 // pred_check_branch
      %75 = sbr.rel (%p73) target = $region17
    $region16: #{color_loss.1} parent=1 // pred_region
      %v76 = vld [vmem:[#allocation2] sm:$0xff]
      %77 = vadd.xlane.f32.xlu0 %v76
      %v78 = vpop.xlane.xlu0 %77
      %v79 = vrot.slane %v78, 4
      %v80 = vadd.f32 %v78, %v79
      %v81 = vrot.slane %v80, 2
      %v82 = vadd.f32 %v80, %v81
      %v83 = vrot.slane %v82, 1
      %v84 = vadd.f32 %v82, %v83
      %s85 = vtos %v84
      %s86 = scalar_lea.smem [#allocation3], 0
      %87 = sst [smem:[%s86]] %s85
    $region17: #{color_loss.1} parent=1 // pred_fallthru
      _
    // Predicated region
    $region18: #{color_loss.1} parent=1 // pred_check
      _
    $region19: #{color_loss.1} parent=1 // pred_check_branch
      %89 = sbr.rel (0) target = $region21
    $region20: #{color_loss.1} parent=1 // pred_region
      %s91 = ssub.s32 16, 16
      %92 = vsyncadd [#allocation4], %s91
      %95 = dma.smem_to_hbm [#allocation3], 16, %s2, [#allocation4]
    $region21: #{color_loss.1} parent=1 // pred_fallthru
      _
    // Predicated region
    $region22: #{color_loss.1} parent=1 // pred_check
      _
    $region23: #{color_loss.1} parent=1 // pred_check_branch
      %97 = sbr.rel (0) target = $region25
    $region24: #{color_loss.1} parent=1 // pred_region
      %98 = dma.done [#allocation4], 16
    $region25: #{color_loss.1} parent=1 // pred_fallthru
      _
    %99 = sfence
    %100 = vsyncpa [#allocation4], 1

</llo_original>
